<compile_context>
chip_gen: v7x
topology: tpu7x:2x2x1
jax: 0.10.0
libtpu: 0.0.40
codegen_flags: <defaults>
</compile_context>

<pallas_src>
import functools

import jax
import jax.numpy as jnp
import numpy as np
from jax.experimental import pallas as pl
from jax.experimental.pallas import tpu as pltpu

_MIB = 1024 * 1024


def _round_up(x, m):
    return ((x + m - 1) // m) * m


@functools.lru_cache(maxsize=None)
def _make_basis(L, L_pad, F_pad):
    """Stacked real-DFT basis [cos ; -sin] of shape (2*F_pad, L_pad).

    Rows [F, F_pad), rows [F_pad+F, 2*F_pad) and columns [L, L_pad) are exact zeros,
    so padding contributes exactly 0 magnitude.  Angles use integer (k*n) mod L and
    float64 trig in numpy (trace-time constants) to avoid f32 phase blow-up.
    """
    F = L // 2 + 1
    k = np.arange(F, dtype=np.int64)[:, None]
    n = np.arange(L, dtype=np.int64)[None, :]
    ang = 2.0 * np.pi * ((k * n) % L).astype(np.float64) / float(L)
    W = np.zeros((2 * F_pad, L_pad), dtype=np.float32)
    W[:F, :L] = np.cos(ang)
    W[F_pad:F_pad + F, :L] = -np.sin(ang)
    return W


@functools.lru_cache(maxsize=None)
def _supports_single_buffering():
    """Probe once whether this JAX/Mosaic build accepts pl.Buffered(1) on a BlockSpec."""
    try:
        def _copy(x_ref, o_ref):
            o_ref[...] = x_ref[...]

        x = jnp.zeros((8, 128), jnp.float32)
        out = pl.pallas_call(
            _copy,
            out_shape=jax.ShapeDtypeStruct((8, 128), jnp.float32),
            grid=(1,),
            in_specs=[pl.BlockSpec((8, 128), lambda i: (0, 0),
                                   pipeline_mode=pl.Buffered(1))],
            out_specs=pl.BlockSpec((8, 128), lambda i: (0, 0)),
        )(x)
        jax.block_until_ready(out)
        return True
    except Exception:  # older builds: fall back to default double buffering
        return False


def _vmem_capacity_bytes():
    try:
        return int(pltpu.get_tpu_info().vmem_capacity_bytes)
    except Exception:
        return 64 * _MIB  # conservative: v7x per-TensorCore VMEM


def _vmem_usage_bytes(f_pad, tk, tn, in_bytes, w_buffers):
    w_blocks = w_buffers * (2 * f_pad) * tk * in_bytes   # basis tile(s)
    d_blocks = 2 * tk * tn * in_bytes                    # double-buffered diff tile
    out_blocks = 2 * 8 * tn * 4                          # double-buffered partial sums
    acc = (2 * f_pad) * tn * 4                           # f32 accumulator scratch
    epilogue = 4 * f_pad * tn * 4                        # re/im/mag/fold temporaries
    return w_blocks + d_blocks + out_blocks + acc + epilogue


def _choose_tiles(L, N, f_pad, in_bytes, budget, tn_max, tk_max):
    """Largest (TK, TN) multiples of 128 whose worst-case VMEM usage fits the budget."""
    tn_hi = min(_round_up(max(tn_max, 128), 128), _round_up(N, 128))
    tk_hi = min(_round_up(max(tk_max, 128), 128), _round_up(L, 128))
    for tn in range(tn_hi, 127, -128):        # prefer lane-dense (large TN) first
        for tk in range(tk_hi, 127, -128):
            if _vmem_usage_bytes(f_pad, tk, tn, in_bytes, 2) <= budget:
                return tk, tn
    # TODO(synk): tile the F axis too when even (128, 128) does not fit (huge L).
    return 128, 128


def _finalize_partial(total, partial_ref):
    """total: f32 (2*F_pad, TN) accumulated W@d. Writes (8, TN) partial sums."""
    f_pad = total.shape[0] // 2
    re = total[:f_pad, :]
    im = total[f_pad:, :]
    mag = jnp.sqrt(re * re + im * im)  # zero-padded rows/cols contribute exactly 0
    # Pairwise (tree) fold of F_pad sublanes down to 8: sublane-aligned static
    # slices + VPU adds only, log-depth dependency chain.
    chunks = [mag[i * 8:(i + 1) * 8, :] for i in range(f_pad // 8)]
    while len(chunks) > 1:
        nxt = [chunks[i] + chunks[i + 1] for i in range(0, len(chunks) - 1, 2)]
        if len(chunks) % 2:
            nxt.append(chunks[-1])
        chunks = nxt
    partial_ref[0] = chunks[0]


def _fft_loss_kernel_single(w_ref, d_ref, partial_ref):
    # K == 1: whole contraction in one MXU matmul, no accumulator scratch needed.
    prod = jnp.dot(w_ref[...], d_ref[...], preferred_element_type=jnp.float32)
    _finalize_partial(prod, partial_ref)


def _fft_loss_kernel_multi(w_ref, d_ref, partial_ref, acc_ref):
    # K > 1: accumulate the L contraction in f32 scratch, finalize at the last k.
    k = pl.program_id(1)

    @pl.when(k == 0)
    def _():
        acc_ref[...] = jnp.zeros_like(acc_ref)

    acc_ref[...] += jnp.dot(w_ref[...], d_ref[...],
                            preferred_element_type=jnp.float32)

    @pl.when(k == pl.num_programs(1) - 1)
    def _():
        _finalize_partial(acc_ref[...], partial_ref)


def _fft_loss_xla(outputs, batch_y):
    # Tiny-L path: below the MXU systolic depth a dense-DFT matmul is pure overhead.
    diff = (outputs - batch_y).astype(jnp.float32)
    return jnp.mean(jnp.abs(jnp.fft.rfft(diff, axis=1)))


def fft_loss(outputs, batch_y, *, compute_dtype=jnp.bfloat16, tn_max=1024,
             tk_max=512, xla_fallback_below=128, core_parallel=False):
    """outputs, batch_y: float32 [B, L, C]. Returns scalar float32 FFT loss.

    core_parallel=True uses pltpu.CORE_PARALLEL on the N-tile axis to shard the
    grid across v7x's two TensorCores (keep False on single-core v5e/v6e).
    """
    B, L, C = outputs.shape
    assert batch_y.shape == (B, L, C)

    if L < xla_fallback_below:
        return _fft_loss_xla(outputs, batch_y)

    F = L // 2 + 1
    F_pad = _round_up(F, 8)
    N = B * C
    in_bytes = jnp.dtype(compute_dtype).itemsize

    # Generation-aware tile sizes + explicit VMEM limit.
    vmem_cap = _vmem_capacity_bytes()
    budget = int(0.6 * vmem_cap)
    TK, TN = _choose_tiles(L, N, F_pad, in_bytes, budget, tn_max, tk_max)
    L_pad = _round_up(L, TK)
    N_pad = _round_up(N, TN)
    G = N_pad // TN
    K = L_pad // TK

    single_buffer_basis = (K == 1) and _supports_single_buffering()
    usage = _vmem_usage_bytes(F_pad, TK, TN, in_bytes,
                              1 if single_buffer_basis else 2)
    vmem_limit = min(int(0.95 * vmem_cap), max(32 * _MIB, int(1.5 * usage)))

    # Trace-time basis constant (cast to the compute dtype once).
    W = jnp.asarray(_make_basis(L, L_pad, F_pad), dtype=compute_dtype)

    # rfft linearity: diff once, cast to bf16 BEFORE the layout passes (halves the
    # bytes moved), then collapse B,C into one lane-dense N axis and zero-pad.
    diff = (outputs.astype(jnp.float32) - batch_y.astype(jnp.float32))
    d = jnp.transpose(diff.astype(compute_dtype), (1, 0, 2)).reshape(L, N)
    if L_pad != L or N_pad != N:
        d = jnp.pad(d, ((0, L_pad - L), (0, N_pad - N)))  # zeros -> 0 magnitude

    w_kwargs = {"pipeline_mode": pl.Buffered(1)} if single_buffer_basis else {}
    w_spec = pl.BlockSpec((2 * F_pad, TK), lambda g, k: (0, k), **w_kwargs)
    d_spec = pl.BlockSpec((TK, TN), lambda g, k: (k, g))
    out_spec = pl.BlockSpec((1, 8, TN), lambda g, k: (g, 0, 0))

    if K == 1:
        kernel = _fft_loss_kernel_single
        scratch = []
    else:
        kernel = _fft_loss_kernel_multi
        scratch = [pltpu.VMEM((2 * F_pad, TN), jnp.float32)]

    if core_parallel:
        dim_sem = (pltpu.CORE_PARALLEL, pltpu.ARBITRARY)
    else:
        dim_sem = ("parallel", "arbitrary")

    partials = pl.pallas_call(
        kernel,
        out_shape=jax.ShapeDtypeStruct((G, 8, TN), jnp.float32),
        grid_spec=pltpu.PrefetchScalarGridSpec(
            num_scalar_prefetch=0,
            grid=(G, K),                      # K (contraction) is the last axis
            in_specs=[w_spec, d_spec],
            out_specs=out_spec,
            scratch_shapes=scratch,
        ),
        compiler_params=pltpu.CompilerParams(
            dimension_semantics=dim_sem,
            vmem_limit_bytes=vmem_limit,
        ),
    )(W, d)

    # Final cross-lane reduce + mean over the TRUE element count (B * F * C);
    # padded rows/columns contributed exactly zero to the partial sums.
    return jnp.sum(partials, dtype=jnp.float32) / jnp.float32(B * F * C)


def _reference(outputs, batch_y):
    # Pure-JAX reference mirroring the PyTorch module.
    diff = jnp.fft.rfft(outputs, axis=1) - jnp.fft.rfft(batch_y, axis=1)
    return jnp.mean(jnp.abs(diff))


if __name__ == "__main__":
    key = jax.random.PRNGKey(0)

    def _check(B, L, C, **kw):
        k1, k2 = jax.random.split(jax.random.fold_in(key, L))
        outputs = jax.random.normal(k1, (B, L, C), dtype=jnp.float32)
        batch_y = jax.random.normal(k2, (B, L, C), dtype=jnp.float32)
        loss = jax.jit(functools.partial(fft_loss, **kw))(outputs, batch_y)
        jax.block_until_ready(loss)
        ref = _reference(outputs, batch_y)
        np.testing.assert_allclose(np.asarray(loss), np.asarray(ref),
                                   rtol=2e-2, atol=1e-3)
        return loss

    # Main Pallas path: single contraction step, padding on both L and N.
    _check(2, 192, 8)
    # Multi-step contraction path: L tiled along K (tk_max=128 -> K=4) + accumulator.
    _check(2, 448, 4, tk_max=128)
    # Tiny-L guard: routed to the XLA rfft fallback (L below MXU systolic depth).
    _check(2, 16, 8)

    print("KERNEL_OK")
</pallas_src>

<mosaic_0001>
module attributes {stable_mosaic.version = 11 : i64} {
  func.func @_fft_loss_kernel_single(%arg0: i32, %arg1: i32, %arg2: memref<208x256xbf16, #tpu.memory_space<vmem>>, %arg3: memref<256x128xbf16, #tpu.memory_space<vmem>>, %arg4: memref<1x8x128xf32, #tpu.memory_space<vmem>>) attributes {dimension_semantics = [#tpu.dimension_semantics<parallel>, #tpu.dimension_semantics<arbitrary>], iteration_bounds = array<i64: 1, 1>, scalar_prefetch = 0 : i64, scratch_operands = 0 : i64, tpu.core_type = #tpu.core_type<tc>, window_params = [{pipeline_mode = #tpu.pipeline_mode<synchronous>, transform_indices = @transform_0, window_bounds = array<i64: 208, 256>}, {transform_indices = @transform_1, window_bounds = array<i64: 256, 128>}, {transform_indices = @transform_2, window_bounds = array<i64: 1, 8, 128>}]} {
    %c0 = arith.constant 0 : index
    %c0_0 = arith.constant 0 : index
    %0 = vector.load %arg2[%c0, %c0_0] : memref<208x256xbf16, #tpu.memory_space<vmem>>, vector<208x256xbf16>
    %c0_1 = arith.constant 0 : index
    %c0_2 = arith.constant 0 : index
    %1 = vector.load %arg3[%c0_1, %c0_2] : memref<256x128xbf16, #tpu.memory_space<vmem>>, vector<256x128xbf16>
    %cst = arith.constant dense<0.000000e+00> : vector<208x128xf32>
    %2 = tpu.matmul %0, %1, %cst {dimension_numbers = #tpu.dot_dimension_numbers<[1], [0], [0], [1], [0, 0, 1, 1], [], []>} : vector<208x256xbf16>, vector<256x128xbf16>, vector<208x128xf32> -> vector<208x128xf32>
    %3 = vector.extract_strided_slice %2 {offsets = [0, 0], sizes = [104, 128], strides = [1, 1]} : vector<208x128xf32> to vector<104x128xf32>
    %4 = vector.extract_strided_slice %2 {offsets = [104, 0], sizes = [104, 128], strides = [1, 1]} : vector<208x128xf32> to vector<104x128xf32>
    %5 = arith.mulf %3, %3 : vector<104x128xf32>
    %6 = arith.mulf %4, %4 : vector<104x128xf32>
    %7 = arith.addf %5, %6 : vector<104x128xf32>
    %8 = math.sqrt %7 : vector<104x128xf32>
    %9 = vector.extract_strided_slice %8 {offsets = [0, 0], sizes = [8, 128], strides = [1, 1]} : vector<104x128xf32> to vector<8x128xf32>
    %10 = vector.extract_strided_slice %8 {offsets = [8, 0], sizes = [8, 128], strides = [1, 1]} : vector<104x128xf32> to vector<8x128xf32>
    %11 = vector.extract_strided_slice %8 {offsets = [16, 0], sizes = [8, 128], strides = [1, 1]} : vector<104x128xf32> to vector<8x128xf32>
    %12 = vector.extract_strided_slice %8 {offsets = [24, 0], sizes = [8, 128], strides = [1, 1]} : vector<104x128xf32> to vector<8x128xf32>
    %13 = vector.extract_strided_slice %8 {offsets = [32, 0], sizes = [8, 128], strides = [1, 1]} : vector<104x128xf32> to vector<8x128xf32>
    %14 = vector.extract_strided_slice %8 {offsets = [40, 0], sizes = [8, 128], strides = [1, 1]} : vector<104x128xf32> to vector<8x128xf32>
    %15 = vector.extract_strided_slice %8 {offsets = [48, 0], sizes = [8, 128], strides = [1, 1]} : vector<104x128xf32> to vector<8x128xf32>
    %16 = vector.extract_strided_slice %8 {offsets = [56, 0], sizes = [8, 128], strides = [1, 1]} : vector<104x128xf32> to vector<8x128xf32>
    %17 = vector.extract_strided_slice %8 {offsets = [64, 0], sizes = [8, 128], strides = [1, 1]} : vector<104x128xf32> to vector<8x128xf32>
    %18 = vector.extract_strided_slice %8 {offsets = [72, 0], sizes = [8, 128], strides = [1, 1]} : vector<104x128xf32> to vector<8x128xf32>
    %19 = vector.extract_strided_slice %8 {offsets = [80, 0], sizes = [8, 128], strides = [1, 1]} : vector<104x128xf32> to vector<8x128xf32>
    %20 = vector.extract_strided_slice %8 {offsets = [88, 0], sizes = [8, 128], strides = [1, 1]} : vector<104x128xf32> to vector<8x128xf32>
    %21 = vector.extract_strided_slice %8 {offsets = [96, 0], sizes = [8, 128], strides = [1, 1]} : vector<104x128xf32> to vector<8x128xf32>
    %22 = arith.addf %9, %10 : vector<8x128xf32>
    %23 = arith.addf %11, %12 : vector<8x128xf32>
    %24 = arith.addf %13, %14 : vector<8x128xf32>
    %25 = arith.addf %15, %16 : vector<8x128xf32>
    %26 = arith.addf %17, %18 : vector<8x128xf32>
    %27 = arith.addf %19, %20 : vector<8x128xf32>
    %28 = arith.addf %22, %23 : vector<8x128xf32>
    %29 = arith.addf %24, %25 : vector<8x128xf32>
    %30 = arith.addf %26, %27 : vector<8x128xf32>
    %31 = arith.addf %28, %29 : vector<8x128xf32>
    %32 = arith.addf %30, %21 : vector<8x128xf32>
    %33 = arith.addf %31, %32 : vector<8x128xf32>
    %c0_3 = arith.constant 0 : index
    %c0_4 = arith.constant 0 : index
    %c0_5 = arith.constant 0 : index
    %34 = vector.load %arg4[%c0_3, %c0_4, %c0_5] : memref<1x8x128xf32, #tpu.memory_space<vmem>>, vector<1x8x128xf32>
    %35 = vector.shape_cast %34 : vector<1x8x128xf32> to vector<8x128xf32>
    %36 = vector.shape_cast %33 : vector<8x128xf32> to vector<1x8x128xf32>
    tpu.vector_store %arg4[%c0_3, %c0_4, %c0_5], %36 {strides = array<i32>} : memref<1x8x128xf32, #tpu.memory_space<vmem>>, vector<1x8x128xf32>,
    return
  }
  func.func @transform_0(%arg0: i32, %arg1: i32) -> (i32, i32) {
    %c0_i32 = arith.constant 0 : i32
    %c0_i32_0 = arith.constant 0 : i32
    return %c0_i32, %arg1 : i32, i32
  }
  func.func @transform_1(%arg0: i32, %arg1: i32) -> (i32, i32) {
    %c0_i32 = arith.constant 0 : i32
    return %arg1, %arg0 : i32, i32
  }
  func.func @transform_2(%arg0: i32, %arg1: i32) -> (i32, i32, i32) {
    %c0_i32 = arith.constant 0 : i32
    %c0_i32_0 = arith.constant 0 : i32
    %c0_i32_1 = arith.constant 0 : i32
    return %arg0, %c0_i32, %c0_i32_0 : i32, i32, i32
  }
}

</mosaic_0001>

<llo_original>
// kernel: fft_loss.1
$region0: #{fft_loss.1}
  #allocation0 [shape = 'u32[]', space=smem, size = 0x4, offset = 0x4, fixed_abs, tag = 'smem constant byte address 0x4 - core index']
  #allocation1 [shape = 'u32[144,128]{1,0:T(1,128)}', space=vmem, size = 0x12000, scoped, tag = 'internal scratch']
  %s0 = inlined_call_operand.vmem [shape: bf16[208,256], index: 0, kind: input, shape index: {}]
  %s1 = inlined_call_operand.vmem [shape: bf16[256,128], index: 1, kind: input, shape index: {}]
  %s2 = inlined_call_operand.vmem [shape: f32[1,8,128], index: 2, kind: output, shape index: {}]
  %s3 = sld [smem:[#allocation0]]
  $region18: #{fft_loss.1} parent=0
    _
  %s5 = ssub.s32 1, %s3
  %s6 = scalar_select 0, %s5, %s3
  // Predicated region
  $region2: #{fft_loss.1} parent=0 // pred_check
    _
  $region3: #{fft_loss.1} parent=0 // pred_check_branch
    %8 = sbr.rel (0) target = $region5
  $region4: #{fft_loss.1} parent=0 // pred_region
    _
  $region5: #{fft_loss.1} parent=0 // pred_fallthru
    _
  // Predicated region
  $region6: #{fft_loss.1} parent=0 // pred_check
    _
  $region7: #{fft_loss.1} parent=0 // pred_check_branch
    %10 = sbr.rel (0) target = $region9
  $region8: #{fft_loss.1} parent=0 // pred_region
    _
  $region9: #{fft_loss.1} parent=0 // pred_fallthru
    _
  %v12 = vld [vmem:[%s0] sm:$0xff]
  %v13 = vld [vmem:[%s0 + $0x8] sm:$0xff]
  %v14 = vld [vmem:[%s0 + $0x10] sm:$0xff]
  %v15 = vld [vmem:[%s0 + $0x18] sm:$0xff]
  %v16 = vld [vmem:[%s0 + $0x20] sm:$0xff]
  %v17 = vld [vmem:[%s0 + $0x28] sm:$0xff]
  %v18 = vld [vmem:[%s0 + $0x30] sm:$0xff]
  %v19 = vld [vmem:[%s0 + $0x38] sm:$0xff]
  %v20 = vld [vmem:[%s0 + $0x40] sm:$0xff]
  %v21 = vld [vmem:[%s0 + $0x48] sm:$0xff]
  %v22 = vld [vmem:[%s0 + $0x50] sm:$0xff]
  %v23 = vld [vmem:[%s0 + $0x58] sm:$0xff]
  %v24 = vld [vmem:[%s0 + $0x60] sm:$0xff]
  %v25 = vld [vmem:[%s0 + $0x68] sm:$0xff]
  %v26 = vld [vmem:[%s0 + $0x70] sm:$0xff]
  %v27 = vld [vmem:[%s0 + $0x78] sm:$0xff]
  %v28 = vld [vmem:[%s0 + $0x80] sm:$0xff]
  %v29 = vld [vmem:[%s0 + $0x88] sm:$0xff]
  %v30 = vld [vmem:[%s0 + $0x90] sm:$0xff]
  %v31 = vld [vmem:[%s0 + $0x98] sm:$0xff]
  %v32 = vld [vmem:[%s0 + $0xa0] sm:$0xff]
  %v33 = vld [vmem:[%s0 + $0xa8] sm:$0xff]
  %v34 = vld [vmem:[%s0 + $0xb0] sm:$0xff]
  %v35 = vld [vmem:[%s0 + $0xb8] sm:$0xff]
  %v36 = vld [vmem:[%s0 + $0xc0] sm:$0xff]
  %v37 = vld [vmem:[%s0 + $0xc8] sm:$0xff]
  %v38 = vld [vmem:[%s1] sm:$0xf]
  %v39 = vld [vmem:[%s1 + $0x4] sm:$0xf]
  %v40 = vld [vmem:[%s1 + $0x8] sm:$0xf]
  %v41 = vld [vmem:[%s1 + $0xc] sm:$0xf]
  %v42 = vld [vmem:[%s1 + $0x10] sm:$0xf]
  %v43 = vld [vmem:[%s1 + $0x14] sm:$0xf]
  %v44 = vld [vmem:[%s1 + $0x18] sm:$0xf]
  %v45 = vld [vmem:[%s1 + $0x1c] sm:$0xf]
  %v46 = vld [vmem:[%s1 + $0x20] sm:$0xf]
  %v47 = vld [vmem:[%s1 + $0x24] sm:$0xf]
  %v48 = vld [vmem:[%s1 + $0x28] sm:$0xf]
  %v49 = vld [vmem:[%s1 + $0x2c] sm:$0xf]
  %v50 = vld [vmem:[%s1 + $0x30] sm:$0xf]
  %v51 = vld [vmem:[%s1 + $0x34] sm:$0xf]
  %v52 = vld [vmem:[%s1 + $0x38] sm:$0xf]
  %v53 = vld [vmem:[%s1 + $0x3c] sm:$0xf]
  %v54 = vld [vmem:[%s1 + $0x40] sm:$0xf]
  %v55 = vld [vmem:[%s1 + $0x44] sm:$0xf]
  %v56 = vld [vmem:[%s1 + $0x48] sm:$0xf]
  %v57 = vld [vmem:[%s1 + $0x4c] sm:$0xf]
  %v58 = vld [vmem:[%s1 + $0x50] sm:$0xf]
  %v59 = vld [vmem:[%s1 + $0x54] sm:$0xf]
  %v60 = vld [vmem:[%s1 + $0x58] sm:$0xf]
  %v61 = vld [vmem:[%s1 + $0x5c] sm:$0xf]
  %v62 = vld [vmem:[%s1 + $0x60] sm:$0xf]
  %v63 = vld [vmem:[%s1 + $0x64] sm:$0xf]
  %v64 = vld [vmem:[%s1 + $0x68] sm:$0xf]
  %v65 = vld [vmem:[%s1 + $0x6c] sm:$0xf]
  %v66 = vld [vmem:[%s1 + $0x70] sm:$0xf]
  %v67 = vld [vmem:[%s1 + $0x74] sm:$0xf]
  %v68 = vld [vmem:[%s1 + $0x78] sm:$0xf]
  %v69 = vld [vmem:[%s1 + $0x7c] sm:$0xf]
  %v96 = vunpack.c.l.b16 %v12
  %v97 = vunpack.c.h.b16 %v12
  %v98 = vunpack.c.l.b16 %v13
  %v99 = vunpack.c.h.b16 %v13
  %v100 = vunpack.c.l.b16 %v14
  %v101 = vunpack.c.h.b16 %v14
  %v102 = vunpack.c.l.b16 %v15
  %v103 = vunpack.c.h.b16 %v15
  %v104 = vunpack.c.l.b16 %v16
  %v105 = vunpack.c.h.b16 %v16
  %v106 = vunpack.c.l.b16 %v17
  %v107 = vunpack.c.h.b16 %v17
  %v108 = vunpack.c.l.b16 %v18
  %v109 = vunpack.c.h.b16 %v18
  %v110 = vunpack.c.l.b16 %v19
  %v111 = vunpack.c.h.b16 %v19
  %v112 = vunpack.c.l.b16 %v20
  %v113 = vunpack.c.h.b16 %v20
  %v114 = vunpack.c.l.b16 %v21
  %v115 = vunpack.c.h.b16 %v21
  %v116 = vunpack.c.l.b16 %v22
  %v117 = vunpack.c.h.b16 %v22
  %v118 = vunpack.c.l.b16 %v23
  %v119 = vunpack.c.h.b16 %v23
  %v120 = vunpack.c.l.b16 %v24
  %v121 = vunpack.c.h.b16 %v24
  %v122 = vunpack.c.l.b16 %v25
  %v123 = vunpack.c.h.b16 %v25
  %v124 = vunpack.c.l.b16 %v26
  %v125 = vunpack.c.h.b16 %v26
  %v126 = vunpack.c.l.b16 %v27
  %v127 = vunpack.c.h.b16 %v27
  %v128 = vunpack.c.l.b16 %v28
  %v129 = vunpack.c.h.b16 %v28
  %v130 = vunpack.c.l.b16 %v29
  %v131 = vunpack.c.h.b16 %v29
  %v132 = vunpack.c.l.b16 %v30
  %v133 = vunpack.c.h.b16 %v30
  %v134 = vunpack.c.l.b16 %v31
  %v135 = vunpack.c.h.b16 %v31
  %v136 = vunpack.c.l.b16 %v32
  %v137 = vunpack.c.h.b16 %v32
  %v138 = vunpack.c.l.b16 %v33
  %v139 = vunpack.c.h.b16 %v33
  %v140 = vunpack.c.l.b16 %v34
  %v141 = vunpack.c.h.b16 %v34
  %v142 = vunpack.c.l.b16 %v35
  %v143 = vunpack.c.h.b16 %v35
  %v144 = vunpack.c.l.b16 %v36
  %v145 = vunpack.c.h.b16 %v36
  %v146 = vunpack.c.l.b16 %v37
  %v147 = vunpack.c.h.b16 %v37
  %v148 = vpack.c.b16 %v98, %v96
  %v149 = vpack.c.b16 %v99, %v97
  %v150 = vpack.c.b16 %v102, %v100
  %v151 = vpack.c.b16 %v103, %v101
  %v152 = vpack.c.b16 %v106, %v104
  %v153 = vpack.c.b16 %v107, %v105
  %v154 = vpack.c.b16 %v110, %v108
  %v155 = vpack.c.b16 %v111, %v109
  %v156 = vpack.c.b16 %v114, %v112
  %v157 = vpack.c.b16 %v115, %v113
  %v158 = vpack.c.b16 %v118, %v116
  %v159 = vpack.c.b16 %v119, %v117
  %v160 = vpack.c.b16 %v122, %v120
  %v161 = vpack.c.b16 %v123, %v121
  %v162 = vpack.c.b16 %v126, %v124
  %v163 = vpack.c.b16 %v127, %v125
  %v164 = vpack.c.b16 %v130, %v128
  %v165 = vpack.c.b16 %v131, %v129
  %v166 = vpack.c.b16 %v134, %v132
  %v167 = vpack.c.b16 %v135, %v133
  %v168 = vpack.c.b16 %v138, %v136
  %v169 = vpack.c.b16 %v139, %v137
  %v170 = vpack.c.b16 %v142, %v140
  %v171 = vpack.c.b16 %v143, %v141
  %v172 = vpack.c.b16 %v146, %v144
  %v173 = vpack.c.b16 %v147, %v145
  %v232 = vunpack.c.l.b16 %v38
  %v233 = vunpack.c.l.b16 %v39
  %v234 = vunpack.c.l.b16 %v40
  %v235 = vunpack.c.l.b16 %v41
  %v236 = vunpack.c.l.b16 %v42
  %v237 = vunpack.c.l.b16 %v43
  %v238 = vunpack.c.l.b16 %v44
  %v239 = vunpack.c.l.b16 %v45
  %v240 = vunpack.c.l.b16 %v46
  %v241 = vunpack.c.l.b16 %v47
  %v242 = vunpack.c.l.b16 %v48
  %v243 = vunpack.c.l.b16 %v49
  %v244 = vunpack.c.l.b16 %v50
  %v245 = vunpack.c.l.b16 %v51
  %v246 = vunpack.c.l.b16 %v52
  %v247 = vunpack.c.l.b16 %v53
  %v248 = vunpack.c.l.b16 %v54
  %v249 = vunpack.c.l.b16 %v55
  %v250 = vunpack.c.l.b16 %v56
  %v251 = vunpack.c.l.b16 %v57
  %v252 = vunpack.c.l.b16 %v58
  %v253 = vunpack.c.l.b16 %v59
  %v254 = vunpack.c.l.b16 %v60
  %v255 = vunpack.c.l.b16 %v61
  %v256 = vunpack.c.l.b16 %v62
  %v257 = vunpack.c.l.b16 %v63
  %v258 = vunpack.c.l.b16 %v64
  %v259 = vunpack.c.l.b16 %v65
  %v260 = vunpack.c.l.b16 %v66
  %v261 = vunpack.c.l.b16 %v67
  %v262 = vunpack.c.l.b16 %v68
  %v263 = vunpack.c.l.b16 %v69
  %v264 = vpack.c.b16 %v233, %v232
  %v265 = vpack.c.b16 %v235, %v234
  %v266 = vpack.c.b16 %v237, %v236
  %v267 = vpack.c.b16 %v239, %v238
  %v268 = vpack.c.b16 %v241, %v240
  %v269 = vpack.c.b16 %v243, %v242
  %v270 = vpack.c.b16 %v245, %v244
  %v271 = vpack.c.b16 %v247, %v246
  %v272 = vpack.c.b16 %v249, %v248
  %v273 = vpack.c.b16 %v251, %v250
  %v274 = vpack.c.b16 %v253, %v252
  %v275 = vpack.c.b16 %v255, %v254
  %v276 = vpack.c.b16 %v257, %v256
  %v277 = vpack.c.b16 %v259, %v258
  %v278 = vpack.c.b16 %v261, %v260
  %v279 = vpack.c.b16 %v263, %v262
  %296 = vmatprep.subr.bf16.mxu0 0
  %297 = vmatpush1.bf16.msra.mxu0 %v264
  %298 = vmatprep.subr.bf16.mxu0 0
  %299 = vmatpush1.bf16.msra.mxu0 %v265
  %300 = vmatprep.subr.bf16.mxu0 0
  %301 = vmatpush1.bf16.msra.mxu0 %v266
  %302 = vmatprep.subr.bf16.mxu0 0
  %303 = vmatpush1.bf16.msra.mxu0 %v267
  %304 = vmatprep.subr.bf16.mxu0 0
  %305 = vmatpush1.bf16.msra.mxu0 %v268
  %306 = vmatprep.subr.bf16.mxu0 0
  %307 = vmatpush1.bf16.msra.mxu0 %v269
  %308 = vmatprep.subr.bf16.mxu0 0
  %309 = vmatpush1.bf16.msra.mxu0 %v270
  %310 = vmatprep.subr.bf16.mxu0 0
  %311 = vmatpush1.bf16.msra.mxu0 %v271
  %312 = vmatprep.subr.bf16.mxu0 0
  %313 = vmatpush1.bf16.msra.mxu0 %v272
  %314 = vmatprep.subr.bf16.mxu0 0
  %315 = vmatpush1.bf16.msra.mxu0 %v273
  %316 = vmatprep.subr.bf16.mxu0 0
  %317 = vmatpush1.bf16.msra.mxu0 %v274
  %318 = vmatprep.subr.bf16.mxu0 0
  %319 = vmatpush1.bf16.msra.mxu0 %v275
  %320 = vmatprep.subr.bf16.mxu0 0
  %321 = vmatpush1.bf16.msra.mxu0 %v276
  %322 = vmatprep.subr.bf16.mxu0 0
  %323 = vmatpush1.bf16.msra.mxu0 %v277
  %324 = vmatprep.subr.bf16.mxu0 0
  %325 = vmatpush1.bf16.msra.mxu0 %v278
  %326 = vmatprep.subr.bf16.mxu0 0
  %327 = vmatpush1.bf16.msra.mxu0 %v279
  %328 = vmatprep.mubr.bf16.mxu0 %v149
  %329 = vmatmul.mubr.bf16.gmra.mrb[0].mxu0 %v148
  %v330 = vpop.f32.mrb[0].mxu0
  %v331 = vadd.f32 0.0, %v330
  %v332 = vpop.f32.mrb[0].mxu0
  %v333 = vpop.f32.mrb[0].mxu0
  %v334 = vadd.f32 0.0, %v333
  %v335 = vpop.f32.mrb[0].mxu0
  %336 = vmatprep.mubr.bf16.mxu0 %v151
  %337 = vmatmul.mubr.bf16.gmra.mrb[0].mxu0 %v150
  %v338 = vpop.f32.mrb[0].mxu0
  %v339 = vadd.f32 0.0, %v338
  %v340 = vpop.f32.mrb[0].mxu0
  %v341 = vpop.f32.mrb[0].mxu0
  %v342 = vadd.f32 0.0, %v341
  %v343 = vpop.f32.mrb[0].mxu0
  %344 = vmatprep.mubr.bf16.mxu0 %v153
  %345 = vmatmul.mubr.bf16.gmra.mrb[0].mxu0 %v152
  %v346 = vpop.f32.mrb[0].mxu0
  %v347 = vadd.f32 0.0, %v346
  %v348 = vpop.f32.mrb[0].mxu0
  %v349 = vpop.f32.mrb[0].mxu0
  %v350 = vadd.f32 0.0, %v349
  %v351 = vpop.f32.mrb[0].mxu0
  %352 = vmatprep.mubr.bf16.mxu0 %v155
  %353 = vmatmul.mubr.bf16.gmra.mrb[0].mxu0 %v154
  %v354 = vpop.f32.mrb[0].mxu0
  %v355 = vadd.f32 0.0, %v354
  %v356 = vpop.f32.mrb[0].mxu0
  %v357 = vpop.f32.mrb[0].mxu0
  %v358 = vadd.f32 0.0, %v357
  %v359 = vpop.f32.mrb[0].mxu0
  %360 = vmatprep.mubr.bf16.mxu0 %v157
  %361 = vmatmul.mubr.bf16.gmra.mrb[0].mxu0 %v156
  %v362 = vpop.f32.mrb[0].mxu0
  %v363 = vadd.f32 0.0, %v362
  %v364 = vpop.f32.mrb[0].mxu0
  %v365 = vpop.f32.mrb[0].mxu0
  %v366 = vadd.f32 0.0, %v365
  %v367 = vpop.f32.mrb[0].mxu0
  %368 = vmatprep.mubr.bf16.mxu0 %v159
  %369 = vmatmul.mubr.bf16.gmra.mrb[0].mxu0 %v158
  %v370 = vpop.f32.mrb[0].mxu0
  %v371 = vadd.f32 0.0, %v370
  %v372 = vpop.f32.mrb[0].mxu0
  %v373 = vpop.f32.mrb[0].mxu0
  %v374 = vadd.f32 0.0, %v373
  %v375 = vpop.f32.mrb[0].mxu0
  %376 = vmatprep.mubr.bf16.mxu0 %v161
  %377 = vmatmul.mubr.bf16.gmra.mrb[0].mxu0 %v160
  %v378 = vpop.f32.mrb[0].mxu0
  %v379 = vadd.f32 0.0, %v378
  %v380 = vpop.f32.mrb[0].mxu0
  %v381 = vpop.f32.mrb[0].mxu0
  %v382 = vadd.f32 0.0, %v381
  %v383 = vpop.f32.mrb[0].mxu0
  %384 = vmatprep.mubr.bf16.mxu0 %v163
  %385 = vmatmul.mubr.bf16.gmra.mrb[0].mxu0 %v162
  %v386 = vpop.f32.mrb[0].mxu0
  %v387 = vadd.f32 0.0, %v386
  %v388 = vpop.f32.mrb[0].mxu0
  %v389 = vpop.f32.mrb[0].mxu0
  %v390 = vadd.f32 0.0, %v389
  %v391 = vpop.f32.mrb[0].mxu0
  %392 = vmatprep.mubr.bf16.mxu0 %v165
  %393 = vmatmul.mubr.bf16.gmra.mrb[0].mxu0 %v164
  %v394 = vpop.f32.mrb[0].mxu0
  %v395 = vadd.f32 0.0, %v394
  %v396 = vpop.f32.mrb[0].mxu0
  %v397 = vpop.f32.mrb[0].mxu0
  %v398 = vadd.f32 0.0, %v397
  %v399 = vpop.f32.mrb[0].mxu0
  %400 = vmatprep.mubr.bf16.mxu0 %v167
  %401 = vmatmul.mubr.bf16.gmra.mrb[0].mxu0 %v166
  %v402 = vpop.f32.mrb[0].mxu0
  %v403 = vadd.f32 0.0, %v402
  %v404 = vpop.f32.mrb[0].mxu0
  %v405 = vpop.f32.mrb[0].mxu0
  %v406 = vadd.f32 0.0, %v405
  %v407 = vpop.f32.mrb[0].mxu0
  %408 = vmatprep.mubr.bf16.mxu0 %v169
  %409 = vmatmul.mubr.bf16.gmra.mrb[0].mxu0 %v168
  %v410 = vpop.f32.mrb[0].mxu0
  %v411 = vadd.f32 0.0, %v410
  %v412 = vpop.f32.mrb[0].mxu0
  %v413 = vpop.f32.mrb[0].mxu0
  %v414 = vadd.f32 0.0, %v413
  %v415 = vpop.f32.mrb[0].mxu0
  %416 = vmatprep.mubr.bf16.mxu0 %v171
  %417 = vmatmul.mubr.bf16.gmra.mrb[0].mxu0 %v170
  %v418 = vpop.f32.mrb[0].mxu0
  %v419 = vadd.f32 0.0, %v418
  %v420 = vpop.f32.mrb[0].mxu0
  %v421 = vpop.f32.mrb[0].mxu0
  %v422 = vadd.f32 0.0, %v421
  %v423 = vpop.f32.mrb[0].mxu0
  %424 = vmatprep.mubr.bf16.mxu0 %v173
  %425 = vmatmul.mubr.bf16.gmra.mrb[0].mxu0 %v172
  %v426 = vpop.f32.mrb[0].mxu0
  %v427 = vadd.f32 0.0, %v426
  %v428 = vpop.f32.mrb[0].mxu0
  %v429 = vpop.f32.mrb[0].mxu0
  %v430 = vadd.f32 0.0, %v429
  %v431 = vpop.f32.mrb[0].mxu0
  %432 = vdwg.mxu0
  %v433 = vmul.f32 %v331, %v331
  %v434 = vmul.f32 %v334, %v334
  %v435 = vmul.f32 %v339, %v339
  %v436 = vmul.f32 %v342, %v342
  %v437 = vmul.f32 %v347, %v347
  %v438 = vmul.f32 %v350, %v350
  %v439 = vmul.f32 %v355, %v355
  %v440 = vmul.f32 %v358, %v358
  %v441 = vmul.f32 %v363, %v363
  %v442 = vmul.f32 %v366, %v366
  %v443 = vmul.f32 %v371, %v371
  %v444 = vmul.f32 %v374, %v374
  %v445 = vmul.f32 %v379, %v379
  %v446 = vmul.f32 %v382, %v382
  %v447 = vmul.f32 %v387, %v387
  %v448 = vmul.f32 %v390, %v390
  %v449 = vmul.f32 %v395, %v395
  %v450 = vmul.f32 %v398, %v398
  %v451 = vmul.f32 %v403, %v403
  %v452 = vmul.f32 %v406, %v406
  %v453 = vmul.f32 %v411, %v411
  %v454 = vmul.f32 %v414, %v414
  %v455 = vmul.f32 %v419, %v419
  %v456 = vmul.f32 %v422, %v422
  %v457 = vmul.f32 %v427, %v427
  %v458 = vmul.f32 %v430, %v430
  %v459 = vadd.f32 %v433, %v446
  %v460 = vadd.f32 %v434, %v447
  %v461 = vadd.f32 %v435, %v448
  %v462 = vadd.f32 %v436, %v449
  %v463 = vadd.f32 %v437, %v450
  %v464 = vadd.f32 %v438, %v451
  %v465 = vadd.f32 %v439, %v452
  %v466 = vadd.f32 %v440, %v453
  %v467 = vadd.f32 %v441, %v454
  %v468 = vadd.f32 %v442, %v455
  %v469 = vadd.f32 %v443, %v456
  %v470 = vadd.f32 %v444, %v457
  %v471 = vadd.f32 %v445, %v458
  %v472 = vrsqrt.pop %v459
  %v473 = vmul.f32 %v459, %v472
  %vm474 = vcmp.eq.f32.partialorder %v459, inf
  %v475 = vsel %vm474, %v459, %v473
  %vm476 = vcmp.eq.f32.partialorder %v459, 0.0
  %v477 = vand.u32 %v459, 2147483648
  %v478 = vsel %vm476, %v477, %v475
  %v479 = vrsqrt.pop %v460
  %v480 = vmul.f32 %v460, %v479
  %vm481 = vcmp.eq.f32.partialorder %v460, inf
  %v482 = vsel %vm481, %v460, %v480
  %vm483 = vcmp.eq.f32.partialorder %v460, 0.0
  %v484 = vand.u32 %v460, 2147483648
  %v485 = vsel %vm483, %v484, %v482
  %v486 = vrsqrt.pop %v461
  %v487 = vmul.f32 %v461, %v486
  %vm488 = vcmp.eq.f32.partialorder %v461, inf
  %v489 = vsel %vm488, %v461, %v487
  %vm490 = vcmp.eq.f32.partialorder %v461, 0.0
  %v491 = vand.u32 %v461, 2147483648
  %v492 = vsel %vm490, %v491, %v489
  %v493 = vrsqrt.pop %v462
  %v494 = vmul.f32 %v462, %v493
  %vm495 = vcmp.eq.f32.partialorder %v462, inf
  %v496 = vsel %vm495, %v462, %v494
  %vm497 = vcmp.eq.f32.partialorder %v462, 0.0
  %v498 = vand.u32 %v462, 2147483648
  %v499 = vsel %vm497, %v498, %v496
  %v500 = vrsqrt.pop %v463
  %v501 = vmul.f32 %v463, %v500
  %vm502 = vcmp.eq.f32.partialorder %v463, inf
  %v503 = vsel %vm502, %v463, %v501
  %vm504 = vcmp.eq.f32.partialorder %v463, 0.0
  %v505 = vand.u32 %v463, 2147483648
  %v506 = vsel %vm504, %v505, %v503
  %v507 = vrsqrt.pop %v464
  %v508 = vmul.f32 %v464, %v507
  %vm509 = vcmp.eq.f32.partialorder %v464, inf
  %v510 = vsel %vm509, %v464, %v508
  %vm511 = vcmp.eq.f32.partialorder %v464, 0.0
  %v512 = vand.u32 %v464, 2147483648
  %v513 = vsel %vm511, %v512, %v510
  %v514 = vrsqrt.pop %v465
  %v515 = vmul.f32 %v465, %v514
  %vm516 = vcmp.eq.f32.partialorder %v465, inf
  %v517 = vsel %vm516, %v465, %v515
  %vm518 = vcmp.eq.f32.partialorder %v465, 0.0
  %v519 = vand.u32 %v465, 2147483648
  %v520 = vsel %vm518, %v519, %v517
  %v521 = vrsqrt.pop %v466
  %v522 = vmul.f32 %v466, %v521
  %vm523 = vcmp.eq.f32.partialorder %v466, inf
  %v524 = vsel %vm523, %v466, %v522
  %vm525 = vcmp.eq.f32.partialorder %v466, 0.0
  %v526 = vand.u32 %v466, 2147483648
  %v527 = vsel %vm525, %v526, %v524
  %v528 = vrsqrt.pop %v467
  %v529 = vmul.f32 %v467, %v528
  %vm530 = vcmp.eq.f32.partialorder %v467, inf
  %v531 = vsel %vm530, %v467, %v529
  %vm532 = vcmp.eq.f32.partialorder %v467, 0.0
  %v533 = vand.u32 %v467, 2147483648
  %v534 = vsel %vm532, %v533, %v531
  %v535 = vrsqrt.pop %v468
  %v536 = vmul.f32 %v468, %v535
  %vm537 = vcmp.eq.f32.partialorder %v468, inf
  %v538 = vsel %vm537, %v468, %v536
  %vm539 = vcmp.eq.f32.partialorder %v468, 0.0
  %v540 = vand.u32 %v468, 2147483648
  %v541 = vsel %vm539, %v540, %v538
  %v542 = vrsqrt.pop %v469
  %v543 = vmul.f32 %v469, %v542
  %vm544 = vcmp.eq.f32.partialorder %v469, inf
  %v545 = vsel %vm544, %v469, %v543
  %vm546 = vcmp.eq.f32.partialorder %v469, 0.0
  %v547 = vand.u32 %v469, 2147483648
  %v548 = vsel %vm546, %v547, %v545
  %v549 = vrsqrt.pop %v470
  %v550 = vmul.f32 %v470, %v549
  %vm551 = vcmp.eq.f32.partialorder %v470, inf
  %v552 = vsel %vm551, %v470, %v550
  %vm553 = vcmp.eq.f32.partialorder %v470, 0.0
  %v554 = vand.u32 %v470, 2147483648
  %v555 = vsel %vm553, %v554, %v552
  %v556 = vrsqrt.pop %v471
  %v557 = vmul.f32 %v471, %v556
  %vm558 = vcmp.eq.f32.partialorder %v471, inf
  %v559 = vsel %vm558, %v471, %v557
  %vm560 = vcmp.eq.f32.partialorder %v471, 0.0
  %v561 = vand.u32 %v471, 2147483648
  %v562 = vsel %vm560, %v561, %v559
  %v563 = vadd.f32 %v478, %v485
  %v564 = vadd.f32 %v492, %v499
  %v565 = vadd.f32 %v506, %v513
  %v566 = vadd.f32 %v520, %v527
  %v567 = vadd.f32 %v534, %v541
  %v568 = vadd.f32 %v548, %v555
  %v569 = vadd.f32 %v563, %v564
  %v570 = vadd.f32 %v565, %v566
  %v571 = vadd.f32 %v567, %v568
  %v572 = vadd.f32 %v569, %v570
  %v573 = vadd.f32 %v571, %v562
  %v574 = vadd.f32 %v572, %v573
  %575 = vst [vmem:[%s2] sm:$0xff] %v574
  // Predicated region
  $region10: #{fft_loss.1} parent=0 // pred_check
    _
  $region11: #{fft_loss.1} parent=0 // pred_check_branch
    %577 = sbr.rel (0) target = $region13
  $region12: #{fft_loss.1} parent=0 // pred_region
    _
  $region13: #{fft_loss.1} parent=0 // pred_fallthru
    _
  // Predicated region
  $region14: #{fft_loss.1} parent=0 // pred_check
    _
  $region15: #{fft_loss.1} parent=0 // pred_check_branch
    %579 = sbr.rel (0) target = $region17
  $region16: #{fft_loss.1} parent=0 // pred_region
    _
  $region17: #{fft_loss.1} parent=0 // pred_fallthru
    _

</llo_original>
